<compile_context>
chip_gen: v7x
topology: tpu7x:2x2x1
jax: 0.10.0
libtpu: 0.0.40
codegen_flags: <defaults>
</compile_context>

<pallas_src>
import functools

import jax
import jax.numpy as jnp
from jax.experimental import pallas as pl
from jax.experimental.pallas import tpu as pltpu

Z_DIM = 11
H_DIM = 256
BN_EPS = 1e-5

_VMEM_LIMIT = 32 * 1024 * 1024  # scoped-VMEM budget valid on v5e/v6e/v7x


def _round_up(v: int, m: int) -> int:
    return (v + m - 1) // m * m


# ---------------------------------------------------------------------------
# Small/medium-batch path: whole batch resident, everything fused, x read once.
# ---------------------------------------------------------------------------
def _fused_kernel(x_ref, w_ref, gamma_ref, beta_ref, a_ref, o_ref, *,
                  inv_n, compute_dtype):
    # x: (N, Z)  w: (Z, H)  gamma/beta: (1, H)  a: (1,) in SMEM  o: (N, H)
    x = x_ref[...].astype(compute_dtype)        # no-op when compute_dtype=f32
    y = jnp.dot(x, w_ref[...], preferred_element_type=jnp.float32)
    # Training-mode batch statistics (biased variance), centered form.
    mean = jnp.sum(y, axis=0, keepdims=True) * inv_n
    c = y - mean
    var = jnp.sum(c * c, axis=0, keepdims=True) * inv_n
    s = gamma_ref[...] * jax.lax.rsqrt(var + BN_EPS)
    z = c * s + beta_ref[...]
    a = a_ref[0]                                # shared PReLU slope (scalar)
    o_ref[...] = jnp.where(z > 0.0, z, a * z).astype(o_ref.dtype)


# ---------------------------------------------------------------------------
# Large-batch path: BN affine already folded into the weight / shift, so the
# per-tile work is just  z = x @ w_scaled + shift  ->  PReLU  ->  store.
# Ragged last tile: garbage rows beyond n produce garbage outputs which Pallas
# masks on the partial-block store; no explicit masking needed.
# ---------------------------------------------------------------------------
def _apply_kernel(x_ref, w_ref, shift_ref, a_ref, o_ref, *, compute_dtype):
    x = x_ref[...].astype(compute_dtype)
    z = jnp.dot(x, w_ref[...], preferred_element_type=jnp.float32)
    z = z + shift_ref[...]
    a = a_ref[0]
    o_ref[...] = jnp.where(z > 0.0, z, a * z).astype(o_ref.dtype)


def former_net(x, w_t, gamma, beta, prelu_a, *,
               block_n=4096, fused_max_n=4096,
               compute_dtype=jnp.float32, out_dtype=jnp.float32):
    """formerNet forward.

    x: (N, Z_DIM); w_t: (Z_DIM, H_DIM) = Linear.weight.T.
    The Linear bias is deliberately not an argument: under training-mode
    BatchNorm a constant per-feature bias cancels in the mean subtraction.
    compute_dtype=bfloat16 feeds the MXU bf16 operands (f32 accumulation);
    out_dtype=bfloat16 halves the dominant HBM write-back traffic.
    """
    n = x.shape[0]
    x = x.astype(jnp.float32)
    w32 = w_t.astype(jnp.float32)
    g2 = gamma.reshape(1, H_DIM).astype(jnp.float32)
    be2 = beta.reshape(1, H_DIM).astype(jnp.float32)
    a1 = jnp.asarray(prelu_a, jnp.float32).reshape(1)

    smem_spec = pl.BlockSpec(memory_space=pltpu.MemorySpace.SMEM)

    if n <= fused_max_n:
        # ---- fused single-launch path: x read once, stats in-kernel ----
        kern = functools.partial(_fused_kernel, inv_n=1.0 / n,
                                 compute_dtype=compute_dtype)
        return pl.pallas_call(
            kern,
            out_shape=jax.ShapeDtypeStruct((n, H_DIM), out_dtype),
            grid_spec=pltpu.PrefetchScalarGridSpec(
                num_scalar_prefetch=0,
                grid=(1,),
                in_specs=[
                    pl.BlockSpec((n, Z_DIM), lambda i: (0, 0)),       # x
                    pl.BlockSpec((Z_DIM, H_DIM), lambda i: (0, 0)),   # W^T
                    pl.BlockSpec((1, H_DIM), lambda i: (0, 0)),       # gamma
                    pl.BlockSpec((1, H_DIM), lambda i: (0, 0)),       # beta
                    smem_spec,                                        # PReLU a
                ],
                out_specs=pl.BlockSpec((n, H_DIM), lambda i: (0, 0)),
            ),
            compiler_params=pltpu.CompilerParams(
                dimension_semantics=("arbitrary",),
                vmem_limit_bytes=_VMEM_LIMIT,
            ),
        )(x, w32.astype(compute_dtype), g2, be2, a1)

    # ---- large-batch path ------------------------------------------------
    # Phase 1 (XLA, reads x once): 11-vector column sum + 11x11 Gram matrix,
    # then tiny (11,256) ops derive the per-feature BN scale/shift.
    inv_n = jnp.float32(1.0 / n)
    xs = jnp.sum(x, axis=0)                          # (Z,)
    gram = x.T @ x                                   # (Z, Z)
    mu_x = xs * inv_n
    cov_x = gram * inv_n - jnp.outer(mu_x, mu_x)     # E[xx^T] - mu mu^T
    mean_y = mu_x @ w32                              # (H,)
    var_y = jnp.sum(w32 * (cov_x @ w32), axis=0)     # diag(W^T Cov_x W), (H,)
    scale = g2[0] * jax.lax.rsqrt(var_y + BN_EPS)    # (H,)
    shift = (be2[0] - mean_y * scale).reshape(1, H_DIM)
    w_scaled = (w32 * scale[None, :]).astype(compute_dtype)   # fold BN scale

    # Phase 2 (Pallas, batch-tiled, "parallel" -> megacore on v7x).
    tb = min(block_n, _round_up(n, 8))               # multiple of 8
    num_tiles = pl.cdiv(n, tb)                       # ragged last block OK

    kern = functools.partial(_apply_kernel, compute_dtype=compute_dtype)
    return pl.pallas_call(
        kern,
        out_shape=jax.ShapeDtypeStruct((n, H_DIM), out_dtype),
        grid_spec=pltpu.PrefetchScalarGridSpec(
            num_scalar_prefetch=0,
            grid=(num_tiles,),
            in_specs=[
                pl.BlockSpec((tb, Z_DIM), lambda i: (i, 0)),          # x tile
                pl.BlockSpec((Z_DIM, H_DIM), lambda i: (0, 0)),       # W*scale
                pl.BlockSpec((1, H_DIM), lambda i: (0, 0)),           # shift
                smem_spec,                                            # PReLU a
            ],
            out_specs=pl.BlockSpec((tb, H_DIM), lambda i: (i, 0)),
        ),
        compiler_params=pltpu.CompilerParams(
            dimension_semantics=("parallel",),
            vmem_limit_bytes=_VMEM_LIMIT,
        ),
    )(x, w_scaled, shift, a1)


def reference(x, w_t, b, gamma, beta, prelu_a):
    y = x @ w_t + b
    mean = jnp.mean(y, axis=0, keepdims=True)
    var = jnp.mean((y - mean) ** 2, axis=0, keepdims=True)
    z = gamma * (y - mean) / jnp.sqrt(var + BN_EPS) + beta
    return jnp.where(z > 0, z, prelu_a * z)


if __name__ == "__main__":
    key = jax.random.PRNGKey(0)
    k_x, k_w, k_b, k_x2 = jax.random.split(key, 4)

    # torch-like deterministic init: Linear U(+-1/sqrt(fan_in)); BN gamma=1,
    # beta=0; PReLU a=0.25.  The bias is only used by the reference — it
    # cancels under training-mode BN, so the kernel drops it.
    bound = 1.0 / (Z_DIM ** 0.5)
    w = jax.random.uniform(k_w, (H_DIM, Z_DIM), jnp.float32, -bound, bound)
    b = jax.random.uniform(k_b, (H_DIM,), jnp.float32, -bound, bound)
    gamma = jnp.ones((H_DIM,), jnp.float32)
    beta = jnp.zeros((H_DIM,), jnp.float32)
    prelu_a = jnp.array(0.25, jnp.float32)
    w_t = w.T  # (Z_DIM, H_DIM)

    # 1) Small batch -> fused single-kernel path (f32, tight tolerance).
    batch = 8
    x = jax.random.normal(k_x, (batch, Z_DIM), dtype=jnp.float32)
    out = jax.block_until_ready(former_net(x, w_t, gamma, beta, prelu_a))
    ref = reference(x, w_t, b, gamma, beta, prelu_a)
    assert out.shape == (batch, H_DIM)
    assert jnp.allclose(out, ref, atol=2e-4, rtol=2e-4), "fused path mismatch"

    # 2) Non-tile-aligned batch, small tile, fused path disabled -> exercises
    #    the Gram-matrix stats + ragged-grid apply pipeline (f32, tight tol).
    batch2 = 203
    x2 = jax.random.normal(k_x2, (batch2, Z_DIM), dtype=jnp.float32)
    out2 = jax.block_until_ready(
        former_net(x2, w_t, gamma, beta, prelu_a,
                   block_n=64, fused_max_n=64))
    ref2 = reference(x2, w_t, b, gamma, beta, prelu_a)
    assert out2.shape == (batch2, H_DIM)
    assert jnp.allclose(out2, ref2, atol=2e-4, rtol=2e-4), "tiled path mismatch"

    # 3) Same tiled config in the fast (bf16 matmul operands + bf16 output)
    #    configuration; tolerance deliberately relaxed for bf16.
    out3 = jax.block_until_ready(
        former_net(x2, w_t, gamma, beta, prelu_a,
                   block_n=64, fused_max_n=64,
                   compute_dtype=jnp.bfloat16, out_dtype=jnp.bfloat16))
    assert out3.shape == (batch2, H_DIM)
    assert jnp.allclose(out3.astype(jnp.float32), ref2, atol=5e-2, rtol=5e-2), \
        "bf16 tiled path mismatch"

    print("KERNEL_OK")
</pallas_src>

<mosaic_0001>
module attributes {stable_mosaic.version = 11 : i64} {
  func.func @_fused_kernel(%arg0: i32, %arg1: memref<8x11xf32, #tpu.memory_space<vmem>>, %arg2: memref<11x256xf32, #tpu.memory_space<vmem>>, %arg3: memref<1x256xf32, #tpu.memory_space<vmem>>, %arg4: memref<1x256xf32, #tpu.memory_space<vmem>>, %arg5: memref<1xf32, #tpu.memory_space<smem>>, %arg6: memref<8x256xf32, #tpu.memory_space<vmem>>) attributes {dimension_semantics = [#tpu.dimension_semantics<arbitrary>], iteration_bounds = array<i64: 1>, scalar_prefetch = 0 : i64, scratch_operands = 0 : i64, tpu.core_type = #tpu.core_type<tc>, window_params = [{pipeline_mode = #tpu.pipeline_mode<synchronous>, transform_indices = @transform_0, window_bounds = array<i64: 8, 11>}, {pipeline_mode = #tpu.pipeline_mode<synchronous>, transform_indices = @transform_1, window_bounds = array<i64: 11, 256>}, {pipeline_mode = #tpu.pipeline_mode<synchronous>, transform_indices = @transform_2, window_bounds = array<i64: 1, 256>}, {pipeline_mode = #tpu.pipeline_mode<synchronous>, transform_indices = @transform_3, window_bounds = array<i64: 1, 256>}, {transform_indices = @transform_4, window_bounds = array<i64: 1>}, {pipeline_mode = #tpu.pipeline_mode<synchronous>, transform_indices = @transform_5, window_bounds = array<i64: 8, 256>}]} {
    %c0 = arith.constant 0 : index
    %c0_0 = arith.constant 0 : index
    %0 = vector.load %arg1[%c0, %c0_0] : memref<8x11xf32, #tpu.memory_space<vmem>>, vector<8x11xf32>
    %c0_1 = arith.constant 0 : index
    %c0_2 = arith.constant 0 : index
    %1 = vector.load %arg2[%c0_1, %c0_2] : memref<11x256xf32, #tpu.memory_space<vmem>>, vector<11x256xf32>
    %cst = arith.constant dense<0.000000e+00> : vector<8x256xf32>
    %2 = tpu.matmul %0, %1, %cst {dimension_numbers = #tpu.dot_dimension_numbers<[1], [0], [0], [1], [0, 0, 1, 1], [], []>} : vector<8x11xf32>, vector<11x256xf32>, vector<8x256xf32> -> vector<8x256xf32>
    %cst_3 = arith.constant dense<0.000000e+00> : vector<256xf32>
    %3 = vector.multi_reduction <add>, %2, %cst_3 [0] : vector<8x256xf32> to vector<256xf32>
    %4 = vector.shape_cast %3 : vector<256xf32> to vector<1x256xf32>
    %cst_4 = arith.constant 1.250000e-01 : f32
    %5 = vector.broadcast %cst_4 : f32 to vector<1x256xf32>
    %6 = arith.mulf %4, %5 : vector<1x256xf32>
    %7 = vector.broadcast %6 : vector<1x256xf32> to vector<8x256xf32>
    %8 = arith.subf %2, %7 : vector<8x256xf32>
    %9 = arith.mulf %8, %8 : vector<8x256xf32>
    %cst_5 = arith.constant dense<0.000000e+00> : vector<256xf32>
    %10 = vector.multi_reduction <add>, %9, %cst_5 [0] : vector<8x256xf32> to vector<256xf32>
    %11 = vector.shape_cast %10 : vector<256xf32> to vector<1x256xf32>
    %cst_6 = arith.constant 1.250000e-01 : f32
    %12 = vector.broadcast %cst_6 : f32 to vector<1x256xf32>
    %13 = arith.mulf %11, %12 : vector<1x256xf32>
    %c0_7 = arith.constant 0 : index
    %c0_8 = arith.constant 0 : index
    %14 = vector.load %arg3[%c0_7, %c0_8] : memref<1x256xf32, #tpu.memory_space<vmem>>, vector<1x256xf32>
    %cst_9 = arith.constant 9.99999974E-6 : f32
    %15 = vector.broadcast %cst_9 : f32 to vector<1x256xf32>
    %16 = arith.addf %13, %15 : vector<1x256xf32>
    %17 = math.rsqrt %16 : vector<1x256xf32>
    %18 = arith.mulf %14, %17 : vector<1x256xf32>
    %19 = vector.broadcast %18 : vector<1x256xf32> to vector<8x256xf32>
    %20 = arith.mulf %8, %19 : vector<8x256xf32>
    %c0_10 = arith.constant 0 : index
    %c0_11 = arith.constant 0 : index
    %21 = vector.load %arg4[%c0_10, %c0_11] : memref<1x256xf32, #tpu.memory_space<vmem>>, vector<1x256xf32>
    %22 = vector.broadcast %21 : vector<1x256xf32> to vector<8x256xf32>
    %23 = arith.addf %20, %22 : vector<8x256xf32>
    %c0_12 = arith.constant 0 : index
    %24 = memref.load %arg5[%c0_12] : memref<1xf32, #tpu.memory_space<smem>>
    %cst_13 = arith.constant 0.000000e+00 : f32
    %25 = vector.broadcast %cst_13 : f32 to vector<8x256xf32>
    %26 = arith.cmpf ogt, %23, %25 : vector<8x256xf32>
    %27 = vector.broadcast %24 : f32 to vector<8x256xf32>
    %28 = arith.mulf %27, %23 : vector<8x256xf32>
    %29 = arith.select %26, %23, %28 : vector<8x256xi1>, vector<8x256xf32>
    %c0_14 = arith.constant 0 : index
    %c0_15 = arith.constant 0 : index
    %30 = vector.load %arg6[%c0_14, %c0_15] : memref<8x256xf32, #tpu.memory_space<vmem>>, vector<8x256xf32>
    tpu.vector_store %arg6[%c0_14, %c0_15], %29 {strides = array<i32>} : memref<8x256xf32, #tpu.memory_space<vmem>>, vector<8x256xf32>,
    return
  }
  func.func @transform_0(%arg0: i32) -> (i32, i32) {
    %c0_i32 = arith.constant 0 : i32
    %c0_i32_0 = arith.constant 0 : i32
    %c0_i32_1 = arith.constant 0 : i32
    return %c0_i32, %c0_i32_0 : i32, i32
  }
  func.func @transform_1(%arg0: i32) -> (i32, i32) {
    %c0_i32 = arith.constant 0 : i32
    %c0_i32_0 = arith.constant 0 : i32
    %c0_i32_1 = arith.constant 0 : i32
    return %c0_i32, %c0_i32_0 : i32, i32
  }
  func.func @transform_2(%arg0: i32) -> (i32, i32) {
    %c0_i32 = arith.constant 0 : i32
    %c0_i32_0 = arith.constant 0 : i32
    %c0_i32_1 = arith.constant 0 : i32
    return %c0_i32, %c0_i32_0 : i32, i32
  }
  func.func @transform_3(%arg0: i32) -> (i32, i32) {
    %c0_i32 = arith.constant 0 : i32
    %c0_i32_0 = arith.constant 0 : i32
    %c0_i32_1 = arith.constant 0 : i32
    return %c0_i32, %c0_i32_0 : i32, i32
  }
  func.func @transform_4(%arg0: i32) -> i32 {
    %c0_i32 = arith.constant 0 : i32
    %c0_i32_0 = arith.constant 0 : i32
    return %c0_i32 : i32
  }
  func.func @transform_5(%arg0: i32) -> (i32, i32) {
    %c0_i32 = arith.constant 0 : i32
    %c0_i32_0 = arith.constant 0 : i32
    %c0_i32_1 = arith.constant 0 : i32
    return %c0_i32, %c0_i32_0 : i32, i32
  }
}

</mosaic_0001>

<llo_original>
// kernel: tpu_custom_call.1
$region0: #{tpu_custom_call.1}
  #allocation0 [shape = 'u32[]', space=smem, size = 0x4, offset = 0x4, fixed_abs, tag = 'smem constant byte address 0x4 - core index']
  #allocation1 [shape = 'u32[144,128]{1,0:T(1,128)}', space=vmem, size = 0x12000, scoped, tag = 'internal scratch']
  #allocation2 [shape = 'f32[1]{0:T(128)S(6)}', space=smem, size = 0x200, scoped, tag = 'scoped memory for tpu_custom_call.1']
  %s0 = inlined_call_operand.hbm [shape: f32[8,11], index: 0, kind: input, shape index: {}]
  %s1 = inlined_call_operand.hbm [shape: f32[11,256], index: 1, kind: input, shape index: {}]
  %s2 = inlined_call_operand.vmem [shape: f32[1,256], index: 2, kind: input, shape index: {}]
  %s3 = inlined_call_operand.vmem [shape: f32[1,256], index: 3, kind: input, shape index: {}]
  %s4 = inlined_call_operand.<no memory space> [shape: f32[1], index: 4, kind: input, shape index: {}]
  %s5 = inlined_call_operand.hbm [shape: f32[8,256], index: 5, kind: output, shape index: {}]
  %s6 = sld [smem:[#allocation0]]
  $region38: #{tpu_custom_call.1} parent=0
    _
  %s8 = ssub.s32 1, %s6
  %s9 = scalar_select 0, %s8, %s6
  %10 = sst [smem:[#allocation2]] %s4
  $region1: #{tpu_custom_call.1} parent=0
    #allocation3 [shape = 'u8[4096]{0}', space=vmem, size = 0x1000, scoped, tag = 'input window, operand 0, single buffered']
    #allocation4 [shape = 's32[1]{0}', space=sflag, size = 0x4, scoped, tag = 'scoped memory for tpu_custom_call.1']
    #allocation5 [shape = 's32[1]{0}', space=sflag, size = 0x4, scoped, tag = 'scoped memory for tpu_custom_call.1']
    #allocation6 [shape = 'u8[16384]{0}', space=vmem, size = 0x4000, scoped, tag = 'input window, operand 1, single buffered']
    #allocation7 [shape = 's32[1]{0}', space=sflag, size = 0x4, scoped, tag = 'scoped memory for tpu_custom_call.1']
    #allocation8 [shape = 'u8[8192]{0}', space=vmem, size = 0x2000, scoped, tag = 'output window, operand 0, single buffered']
    %11 = vsyncpa [#allocation4], 0
    %12 = vsyncpa [#allocation7], 0
    %13 = vsyncpa [#allocation5], 0
    // Predicated region
    $region2: #{tpu_custom_call.1} parent=1 // pred_check
      _
    $region3: #{tpu_custom_call.1} parent=1 // pred_check_branch
      %15 = sbr.rel (0) target = $region5
    $region4: #{tpu_custom_call.1} parent=1 // pred_region
      %s17 = ssub.s32 128, 128
      %18 = vsyncadd [#allocation4], %s17
      %s20 = sshll.u32 [#allocation3], 4
      %s21 = int_to_ptr.vmem [resolvable:$true] %s20
      %23 = dma.hbm_to_vmem [thread:$0]  %s0, 128, %s21, [#allocation4]
    $region5: #{tpu_custom_call.1} parent=1 // pred_fallthru
      _
    // Predicated region
    $region6: #{tpu_custom_call.1} parent=1 // pred_check
      _
    $region7: #{tpu_custom_call.1} parent=1 // pred_check_branch
      %25 = sbr.rel (0) target = $region9
    $region8: #{tpu_custom_call.1} parent=1 // pred_region
      %s27 = ssub.s32 512, 512
      %28 = vsyncadd [#allocation7], %s27
      %s29 = sshll.u32 [#allocation6], 4
      %s30 = int_to_ptr.vmem [resolvable:$true] %s29
      %35 = dma.hbm_to_vmem [thread:$0]  %s1, 512, %s30, [#allocation7], 256, 256, 16
    $region9: #{tpu_custom_call.1} parent=1 // pred_fallthru
      _
    // Predicated region
    $region10: #{tpu_custom_call.1} parent=1 // pred_check
      _
    $region11: #{tpu_custom_call.1} parent=1 // pred_check_branch
      %37 = sbr.rel (0) target = $region13
    $region12: #{tpu_custom_call.1} parent=1 // pred_region
      _
    $region13: #{tpu_custom_call.1} parent=1 // pred_fallthru
      _
    // Predicated region
    $region14: #{tpu_custom_call.1} parent=1 // pred_check
      _
    $region15: #{tpu_custom_call.1} parent=1 // pred_check_branch
      %39 = sbr.rel (0) target = $region17
    $region16: #{tpu_custom_call.1} parent=1 // pred_region
      _
    $region17: #{tpu_custom_call.1} parent=1 // pred_fallthru
      _
    // Predicated region
    $region18: #{tpu_custom_call.1} parent=1 // pred_check
      _
    $region19: #{tpu_custom_call.1} parent=1 // pred_check_branch
      %41 = sbr.rel (0) target = $region21
    $region20: #{tpu_custom_call.1} parent=1 // pred_region
      _
    $region21: #{tpu_custom_call.1} parent=1 // pred_fallthru
      _
    // Predicated region
    $region22: #{tpu_custom_call.1} parent=1 // pred_check
      _
    $region23: #{tpu_custom_call.1} parent=1 // pred_check_branch
      %43 = sbr.rel (0) target = $region25
    $region24: #{tpu_custom_call.1} parent=1 // pred_region
      %44 = dma.done [#allocation4], 128
    $region25: #{tpu_custom_call.1} parent=1 // pred_fallthru
      _
    // Predicated region
    $region26: #{tpu_custom_call.1} parent=1 // pred_check
      _
    $region27: #{tpu_custom_call.1} parent=1 // pred_check_branch
      %46 = sbr.rel (0) target = $region29
    $region28: #{tpu_custom_call.1} parent=1 // pred_region
      %47 = dma.done [#allocation7], 512
    $region29: #{tpu_custom_call.1} parent=1 // pred_fallthru
      _
    %v48 = vld [vmem:[#allocation3] sm:$0xff]
    %v49 = vld [vmem:[#allocation6] sm:$0xff]
    %v50 = vld [vmem:[#allocation6 + $0x8] sm:$0xff]
    %v51 = vld [vmem:[#allocation6 + $0x10] sm:$0x7]
    %v52 = vld [vmem:[#allocation6 + $0x18] sm:$0x7]
    %vm53 = vcmask 89088
    %v55 = vsel %vm53, %v48, 0
    %vm57 = vcmask 1042432
    %v59 = vsel %vm57, %v51, 0
    %v62 = vsel %vm57, %v52, 0
    %64 = vmatprep.subr.mxu0 %v50
    %65 = vmatpush1.msra.mxu0 %v49
    %66 = vmatprep.subr.mxu0 %v62
    %67 = vmatpush1.msra.mxu0 %v59
    %68 = vmatprep.subr.mxu0 0.0
    %69 = vmatpush1.msra.mxu0 0.0
    %70 = vmatprep.subr.mxu0 0.0
    %71 = vmatpush1.msra.mxu0 0.0
    %72 = vmatprep.subr.mxu0 0.0
    %73 = vmatpush1.msra.mxu0 0.0
    %74 = vmatprep.subr.mxu0 0.0
    %75 = vmatpush1.msra.mxu0 0.0
    %76 = vmatprep.subr.mxu0 0.0
    %77 = vmatpush1.msra.mxu0 0.0
    %78 = vmatprep.subr.mxu0 0.0
    %79 = vmatpush1.msra.mxu0 0.0
    %80 = vmatprep.subr.mxu0 0.0
    %81 = vmatpush1.msra.mxu0 0.0
    %82 = vmatprep.subr.mxu0 0.0
    %83 = vmatpush1.msra.mxu0 0.0
    %84 = vmatprep.subr.mxu0 0.0
    %85 = vmatpush1.msra.mxu0 0.0
    %86 = vmatprep.subr.mxu0 0.0
    %87 = vmatpush1.msra.mxu0 0.0
    %88 = vmatprep.subr.mxu0 0.0
    %89 = vmatpush1.msra.mxu0 0.0
    %90 = vmatprep.subr.mxu0 0.0
    %91 = vmatpush1.msra.mxu0 0.0
    %92 = vmatprep.subr.mxu0 0.0
    %93 = vmatpush1.msra.mxu0 0.0
    %94 = vmatprep.subr.mxu0 0.0
    %95 = vmatpush1.msra.mxu0 0.0
    %96 = vmatprep.subr.mxu0 0.0
    %97 = vmatpush1.msra.mxu0 0.0
    %98 = vmatprep.subr.mxu0 0.0
    %99 = vmatpush1.msra.mxu0 0.0
    %100 = vmatprep.subr.mxu0 0.0
    %101 = vmatpush1.msra.mxu0 0.0
    %102 = vmatprep.subr.mxu0 0.0
    %103 = vmatpush1.msra.mxu0 0.0
    %104 = vmatprep.subr.mxu0 0.0
    %105 = vmatpush1.msra.mxu0 0.0
    %106 = vmatprep.subr.mxu0 0.0
    %107 = vmatpush1.msra.mxu0 0.0
    %108 = vmatprep.subr.mxu0 0.0
    %109 = vmatpush1.msra.mxu0 0.0
    %110 = vmatprep.subr.mxu0 0.0
    %111 = vmatpush1.msra.mxu0 0.0
    %112 = vmatprep.subr.mxu0 0.0
    %113 = vmatpush1.msra.mxu0 0.0
    %114 = vmatprep.subr.mxu0 0.0
    %115 = vmatpush1.msra.mxu0 0.0
    %116 = vmatprep.subr.mxu0 0.0
    %117 = vmatpush1.msra.mxu0 0.0
    %118 = vmatprep.subr.mxu0 0.0
    %119 = vmatpush1.msra.mxu0 0.0
    %120 = vmatprep.subr.mxu0 0.0
    %121 = vmatpush1.msra.mxu0 0.0
    %122 = vmatprep.subr.mxu0 0.0
    %123 = vmatpush1.msra.mxu0 0.0
    %124 = vmatprep.subr.mxu0 0.0
    %125 = vmatpush1.msra.mxu0 0.0
    %126 = vmatprep.subr.mxu0 0.0
    %127 = vmatpush1.msra.mxu0 0.0
    %128 = vmatprep.mubr.f32.mxu0 0.0
    %129 = vmatmul.mubr.f32.gmra.mrb[0].mxu0 %v55
    %v130 = vpop.f32.mrb[0].mxu0
    %v131 = vadd.f32 0.0, %v130
    %v132 = vpop.f32.mrb[0].mxu0
    %v133 = vadd.f32 0.0, %v132
    %134 = vdwg.mxu0
    %v135 = vrot.slane %v131, 4
    %v136 = vadd.f32 %v131, %v135
    %v137 = vrot.slane %v136, 2
    %v138 = vadd.f32 %v136, %v137
    %v139 = vrot.slane %v138, 1
    %v140 = vadd.f32 %v138, %v139
    %v141 = vrot.slane %v133, 4
    %v142 = vadd.f32 %v133, %v141
    %v143 = vrot.slane %v142, 2
    %v144 = vadd.f32 %v142, %v143
    %v145 = vrot.slane %v144, 1
    %v146 = vadd.f32 %v144, %v145
    %v147 = vmul.f32 %v140, 0.125
    %v148 = vmul.f32 %v146, 0.125
    %v149 = vsub.f32 %v131, %v147
    %v150 = vsub.f32 %v133, %v148
    %v151 = vmul.f32 %v149, %v149
    %v152 = vmul.f32 %v150, %v150
    %v153 = vrot.slane %v151, 4
    %v154 = vadd.f32 %v151, %v153
    %v155 = vrot.slane %v154, 2
    %v156 = vadd.f32 %v154, %v155
    %v157 = vrot.slane %v156, 1
    %v158 = vadd.f32 %v156, %v157
    %v159 = vrot.slane %v152, 4
    %v160 = vadd.f32 %v152, %v159
    %v161 = vrot.slane %v160, 2
    %v162 = vadd.f32 %v160, %v161
    %v163 = vrot.slane %v162, 1
    %v164 = vadd.f32 %v162, %v163
    %v165 = vmul.f32 %v158, 0.125
    %v166 = vmul.f32 %v164, 0.125
    %v167 = vld [vmem:[%s2] sm:$0x3]
    %v168 = vadd.f32 %v165, 1e-05
    %v169 = vadd.f32 %v166, 1e-05
    %v170 = vrsqrt.pop %v168
    %v171 = vrsqrt.pop %v169
    %v174 = vcombine.low %v170, %v171
    %v176 = vunpack.c.l.s4 1966171168
    %v177 = vunpack.c.0.s8 %v176
    %v178 = vlaneseq
    %v179 = vshrl.u32 %v178, 7
    %v180 = vsub.s32 %v177, %v179
    %v181 = vrot.slane %v174, %v180
    %v183 = vunpack.c.l.s4 1966171168
    %v184 = vunpack.c.0.s8 %v183
    %v185 = vlaneseq
    %v186 = vshrl.u32 %v185, 7
    %v187 = vsub.s32 %v184, %v186
    %v188 = vrot.slane %v181, %v187
    %v190 = vmul.f32 %v167, %v188
    %v192 = vlaneseq
    %v193 = vshrl.u32 %v192, 7
    %v194 = vsub.s32 0, %v193
    %v195 = vrot.slane %v190, %v194
    %v196 = vlaneseq
    %v197 = vshrl.u32 %v196, 7
    %v198 = vsub.s32 1, %v197
    %v199 = vrot.slane %v190, %v198
    %v202 = vmul.f32 %v149, %v195
    %v203 = vmul.f32 %v150, %v199
    %v204 = vld [vmem:[%s3] sm:$0x3]
    %v206 = vlaneseq
    %v207 = vshrl.u32 %v206, 7
    %v208 = vsub.s32 0, %v207
    %v209 = vrot.slane %v204, %v208
    %v210 = vlaneseq
    %v211 = vshrl.u32 %v210, 7
    %v212 = vsub.s32 1, %v211
    %v213 = vrot.slane %v204, %v212
    %v216 = vadd.f32 %v202, %v209
    %v217 = vadd.f32 %v203, %v213
    %s218 = sld [smem:[#allocation2]]
    %vm219 = vcmp.gt.f32.partialorder %v216, 0.0
    %vm220 = vcmp.gt.f32.partialorder %v217, 0.0
    %v221 = vstv %s218
    %v222 = vmul.f32 %v221, %v216
    %v223 = vmul.f32 %v221, %v217
    %v224 = vsel %vm219, %v216, %v222
    %v225 = vsel %vm220, %v217, %v223
    %226 = vst [vmem:[#allocation8] sm:$0xff] %v224
    %227 = vst [vmem:[#allocation8 + $0x8] sm:$0xff] %v225
    // Predicated region
    $region30: #{tpu_custom_call.1} parent=1 // pred_check
      _
    $region31: #{tpu_custom_call.1} parent=1 // pred_check_branch
      %229 = sbr.rel (0) target = $region33
    $region32: #{tpu_custom_call.1} parent=1 // pred_region
      %s231 = ssub.s32 256, 256
      %232 = vsyncadd [#allocation5], %s231
      %s234 = sshll.u32 [#allocation8], 4
      %s235 = int_to_ptr.vmem [resolvable:$true] %s234
      %237 = dma.vmem_to_hbm [thread:$0]  %s235, 256, %s5, [#allocation5]
    $region33: #{tpu_custom_call.1} parent=1 // pred_fallthru
      _
    // Predicated region
    $region34: #{tpu_custom_call.1} parent=1 // pred_check
      _
    $region35: #{tpu_custom_call.1} parent=1 // pred_check_branch
      %239 = sbr.rel (0) target = $region37
    $region36: #{tpu_custom_call.1} parent=1 // pred_region
      %240 = dma.done [#allocation5], 256
    $region37: #{tpu_custom_call.1} parent=1 // pred_fallthru
      _
    %241 = vsyncpa [#allocation4], 1
    %242 = vsyncpa [#allocation7], 1
    %243 = vsyncpa [#allocation5], 1

</llo_original>
